<compile_context>
chip_gen: v7x
topology: tpu7x:2x2x1
jax: 0.10.0
libtpu: 0.0.40
codegen_flags: <defaults>
</compile_context>

<pallas_src>
import functools

import jax
import jax.numpy as jnp
from jax.experimental import pallas as pl
from jax.experimental.pallas import tpu as pltpu


def _momment_loss_kernel(preds_ref, target_ref, seg_ref, out_ref, *,
                         valid_rows, seq_len):
    """One grid step over a (TR, W) tile; writes (TR, G) per-row partials."""
    tr = out_ref.shape[0]

    x = preds_ref[...].astype(jnp.float32)    # (TR, W), W = G * L
    y = target_ref[...].astype(jnp.float32)   # (TR, W)
    s = seg_ref[...]                          # (W, G) one-hot segment-sum matrix

    inv_l = jnp.float32(1.0 / seq_len)
    # Unbiased (torch default) divisor; L == 1 yields NaN just like torch.
    inv_lm1 = jnp.float32(1.0) / jnp.float32(seq_len - 1)

    # Segment sums / sums-of-squares via MXU (single pass over the tile).
    sum_x = jnp.dot(x, s, preferred_element_type=jnp.float32)       # (TR, G)
    ssq_x = jnp.dot(x * x, s, preferred_element_type=jnp.float32)   # (TR, G)
    sum_y = jnp.dot(y, s, preferred_element_type=jnp.float32)
    ssq_y = jnp.dot(y * y, s, preferred_element_type=jnp.float32)

    mean_x = sum_x * inv_l
    mean_y = sum_y * inv_l
    # var = (sum(x^2) - sum(x)^2 / L) / (L - 1); clamp tiny negatives from
    # cancellation before the sqrt.
    var_x = jnp.maximum((ssq_x - sum_x * mean_x) * inv_lm1, 0.0)
    var_y = jnp.maximum((ssq_y - sum_y * mean_y) * inv_lm1, 0.0)

    contrib = (jnp.abs(jnp.sqrt(var_x) - jnp.sqrt(var_y))
               + jnp.abs(mean_x - mean_y))                           # (TR, G)

    # Mask packed rows that fall past the true extent (ragged last block reads
    # unspecified data; the select keeps NaN/Inf from propagating).
    row_ids = (jax.lax.broadcasted_iota(jnp.int32, (tr, 1), 0)
               + pl.program_id(0) * tr)
    out_ref[...] = jnp.where(row_ids < valid_rows, contrib, jnp.float32(0.0))


def _pick_pack_factor(r: int, l: int) -> int:
    """Largest G with G*L <= 128 and R % G == 0 (G rows packed per lane-row)."""
    gmax = max(1, 128 // max(l, 1))
    for g in range(gmax, 0, -1):
        if r % g == 0:
            return g
    return 1


def _pick_row_tile(rp: int, w: int) -> int:
    """Sublane-aligned row tile sized against a conservative VMEM budget."""
    if rp <= 8:
        return rp                       # single block, full extent
    w_pad = pl.cdiv(w, 128) * 128
    # 2 inputs x 2 buffers + in-kernel x*x / y*y temporaries + buffered output.
    per_row_bytes = 24 * w_pad + 1024
    tr = (8 * 1024 * 1024) // per_row_bytes
    tr = max(8, min(int(tr), 2048))
    tr = (tr // 8) * 8
    tr = min(tr, (rp // 8) * 8)
    return int(tr)


def momment_loss(preds: jax.Array, target: jax.Array) -> jax.Array:
    """Pallas implementation of MommentLoss.forward(preds, target).

    preds, target: (B, C, L) arrays. Returns a float32 scalar.
    """
    assert preds.shape == target.shape and preds.ndim == 3
    b, c, l = preds.shape
    r = b * c
    # TODO(synk): L == 1 reproduces torch's NaN (unbiased std of one sample).

    g = _pick_pack_factor(r, l)         # rows packed per lane-row
    w = g * l                           # packed lane width (<= 128 when g > 1)
    rp = r // g                         # packed row count

    p2 = preds.reshape(rp, w)           # free, contiguous reshapes
    t2 = target.reshape(rp, w)

    # seg[j, k] = 1.0 iff lane j belongs to logical row segment k.
    seg = (jnp.arange(w, dtype=jnp.int32)[:, None] // l
           == jnp.arange(g, dtype=jnp.int32)[None, :]).astype(jnp.float32)

    tr = _pick_row_tile(rp, w)
    num_blocks = pl.cdiv(rp, tr)

    kernel = functools.partial(_momment_loss_kernel, valid_rows=rp, seq_len=l)

    partials = pl.pallas_call(
        kernel,
        out_shape=jax.ShapeDtypeStruct((num_blocks * tr, g), jnp.float32),
        grid_spec=pltpu.PrefetchScalarGridSpec(
            num_scalar_prefetch=0,
            grid=(num_blocks,),
            in_specs=[
                pl.BlockSpec((tr, w), lambda i: (i, 0)),
                pl.BlockSpec((tr, w), lambda i: (i, 0)),
                pl.BlockSpec((w, g), lambda i: (0, 0)),   # grid-invariant block
            ],
            out_specs=pl.BlockSpec((tr, g), lambda i: (i, 0)),
        ),
        compiler_params=pltpu.CompilerParams(
            dimension_semantics=("parallel",),
            vmem_limit_bytes=32 * 1024 * 1024,
        ),
    )(p2, t2, seg)

    # Tiny final reduction over per-row partials (padded rows are exact zeros).
    return jnp.sum(partials) / jnp.float32(r)


def momment_loss_ref(preds, target):
    """Pure-JAX reference matching the PyTorch module."""
    std_p = jnp.std(preds, axis=2, ddof=1)
    std_t = jnp.std(target, axis=2, ddof=1)
    mean_p = jnp.mean(preds, axis=2)
    mean_t = jnp.mean(target, axis=2)
    return jnp.mean(jnp.abs(std_p - std_t)) + jnp.mean(jnp.abs(mean_p - mean_t))


if __name__ == "__main__":
    key = jax.random.PRNGKey(0)

    # Primary check: shapes consistent with the module's forward.
    B, C, L = 2, 4, 16
    kp, kt, key = jax.random.split(key, 3)
    preds = jax.random.normal(kp, (B, C, L), dtype=jnp.float32)
    target = jax.random.normal(kt, (B, C, L), dtype=jnp.float32)
    loss = momment_loss(preds, target)
    jax.block_until_ready(loss)
    ref = momment_loss_ref(preds, target)
    assert jnp.allclose(loss, ref, rtol=1e-5, atol=1e-5), (loss, ref)

    # Secondary check: odd sizes (L not dividing 128, R not a multiple of 8).
    B2, C2, L2 = 3, 5, 24
    kp2, kt2 = jax.random.split(key)
    preds2 = jax.random.normal(kp2, (B2, C2, L2), dtype=jnp.float32)
    target2 = jax.random.normal(kt2, (B2, C2, L2), dtype=jnp.float32)
    loss2 = momment_loss(preds2, target2)
    jax.block_until_ready(loss2)
    ref2 = momment_loss_ref(preds2, target2)
    assert jnp.allclose(loss2, ref2, rtol=1e-5, atol=1e-5), (loss2, ref2)

    print("KERNEL_OK")
</pallas_src>

<mosaic_0001>
module attributes {stable_mosaic.version = 11 : i64} {
  func.func @_momment_loss_kernel(%arg0: i32, %arg1: memref<1x128xf32, #tpu.memory_space<vmem>>, %arg2: memref<1x128xf32, #tpu.memory_space<vmem>>, %arg3: memref<128x8xf32, #tpu.memory_space<vmem>>, %arg4: memref<1x8xf32, #tpu.memory_space<vmem>>) attributes {dimension_semantics = [#tpu.dimension_semantics<parallel>], iteration_bounds = array<i64: 1>, scalar_prefetch = 0 : i64, scratch_operands = 0 : i64, tpu.core_type = #tpu.core_type<tc>, window_params = [{transform_indices = @transform_0, window_bounds = array<i64: 1, 128>}, {transform_indices = @transform_1, window_bounds = array<i64: 1, 128>}, {pipeline_mode = #tpu.pipeline_mode<synchronous>, transform_indices = @transform_2, window_bounds = array<i64: 128, 8>}, {transform_indices = @transform_3, window_bounds = array<i64: 1, 8>}]} {
    %c0 = arith.constant 0 : index
    %c0_0 = arith.constant 0 : index
    %0 = vector.load %arg1[%c0, %c0_0] : memref<1x128xf32, #tpu.memory_space<vmem>>, vector<1x128xf32>
    %c0_1 = arith.constant 0 : index
    %c0_2 = arith.constant 0 : index
    %1 = vector.load %arg2[%c0_1, %c0_2] : memref<1x128xf32, #tpu.memory_space<vmem>>, vector<1x128xf32>
    %c0_3 = arith.constant 0 : index
    %c0_4 = arith.constant 0 : index
    %2 = vector.load %arg3[%c0_3, %c0_4] : memref<128x8xf32, #tpu.memory_space<vmem>>, vector<128x8xf32>
    %cst = arith.constant 1.000000e+00 : f32
    %cst_5 = arith.constant 1.500000e+01 : f32
    %3 = arith.divf %cst, %cst_5 : f32
    %cst_6 = arith.constant dense<0.000000e+00> : vector<1x8xf32>
    %4 = tpu.matmul %0, %2, %cst_6 {dimension_numbers = #tpu.dot_dimension_numbers<[1], [0], [0], [1], [0, 0, 1, 1], [], []>} : vector<1x128xf32>, vector<128x8xf32>, vector<1x8xf32> -> vector<1x8xf32>
    %5 = arith.mulf %0, %0 : vector<1x128xf32>
    %cst_7 = arith.constant dense<0.000000e+00> : vector<1x8xf32>
    %6 = tpu.matmul %5, %2, %cst_7 {dimension_numbers = #tpu.dot_dimension_numbers<[1], [0], [0], [1], [0, 0, 1, 1], [], []>} : vector<1x128xf32>, vector<128x8xf32>, vector<1x8xf32> -> vector<1x8xf32>
    %cst_8 = arith.constant dense<0.000000e+00> : vector<1x8xf32>
    %7 = tpu.matmul %1, %2, %cst_8 {dimension_numbers = #tpu.dot_dimension_numbers<[1], [0], [0], [1], [0, 0, 1, 1], [], []>} : vector<1x128xf32>, vector<128x8xf32>, vector<1x8xf32> -> vector<1x8xf32>
    %8 = arith.mulf %1, %1 : vector<1x128xf32>
    %cst_9 = arith.constant dense<0.000000e+00> : vector<1x8xf32>
    %9 = tpu.matmul %8, %2, %cst_9 {dimension_numbers = #tpu.dot_dimension_numbers<[1], [0], [0], [1], [0, 0, 1, 1], [], []>} : vector<1x128xf32>, vector<128x8xf32>, vector<1x8xf32> -> vector<1x8xf32>
    %cst_10 = arith.constant 6.250000e-02 : f32
    %10 = vector.broadcast %cst_10 : f32 to vector<1x8xf32>
    %11 = arith.mulf %4, %10 : vector<1x8xf32>
    %cst_11 = arith.constant 6.250000e-02 : f32
    %12 = vector.broadcast %cst_11 : f32 to vector<1x8xf32>
    %13 = arith.mulf %7, %12 : vector<1x8xf32>
    %14 = arith.mulf %4, %11 : vector<1x8xf32>
    %15 = arith.subf %6, %14 : vector<1x8xf32>
    %16 = vector.broadcast %3 : f32 to vector<1x8xf32>
    %17 = arith.mulf %15, %16 : vector<1x8xf32>
    %cst_12 = arith.constant 0.000000e+00 : f32
    %18 = vector.broadcast %cst_12 : f32 to vector<1x8xf32>
    %19 = arith.maximumf %17, %18 : vector<1x8xf32>
    %20 = arith.mulf %7, %13 : vector<1x8xf32>
    %21 = arith.subf %9, %20 : vector<1x8xf32>
    %22 = vector.broadcast %3 : f32 to vector<1x8xf32>
    %23 = arith.mulf %21, %22 : vector<1x8xf32>
    %cst_13 = arith.constant 0.000000e+00 : f32
    %24 = vector.broadcast %cst_13 : f32 to vector<1x8xf32>
    %25 = arith.maximumf %23, %24 : vector<1x8xf32>
    %26 = math.sqrt %19 : vector<1x8xf32>
    %27 = math.sqrt %25 : vector<1x8xf32>
    %28 = arith.subf %26, %27 : vector<1x8xf32>
    %29 = math.absf %28 : vector<1x8xf32>
    %30 = arith.subf %11, %13 : vector<1x8xf32>
    %31 = math.absf %30 : vector<1x8xf32>
    %32 = arith.addf %29, %31 : vector<1x8xf32>
    %33 = tpu.iota {dimensions = array<i32: 0>} : vector<1x1xi32>
    %c1_i32 = arith.constant 1 : i32
    %34 = arith.muli %arg0, %c1_i32 : i32
    %35 = vector.broadcast %34 : i32 to vector<1x1xi32>
    %36 = arith.addi %33, %35 : vector<1x1xi32>
    %c1_i32_14 = arith.constant 1 : i32
    %37 = vector.broadcast %c1_i32_14 : i32 to vector<1x1xi32>
    %38 = arith.cmpi slt, %36, %37 : vector<1x1xi32>
    %cst_15 = arith.constant 0.000000e+00 : f32
    %39 = vector.shape_cast %38 : vector<1x1xi1> to vector<1x1xi1>
    %40 = vector.broadcast %39 : vector<1x1xi1> to vector<1x8xi1>
    %41 = vector.broadcast %cst_15 : f32 to vector<1x8xf32>
    %42 = arith.select %40, %32, %41 : vector<1x8xi1>, vector<1x8xf32>
    %c0_16 = arith.constant 0 : index
    %c0_17 = arith.constant 0 : index
    %43 = vector.load %arg4[%c0_16, %c0_17] : memref<1x8xf32, #tpu.memory_space<vmem>>, vector<1x8xf32>
    tpu.vector_store %arg4[%c0_16, %c0_17], %42 {strides = array<i32>} : memref<1x8xf32, #tpu.memory_space<vmem>>, vector<1x8xf32>,
    return
  }
  func.func @transform_0(%arg0: i32) -> (i32, i32) {
    %c0_i32 = arith.constant 0 : i32
    %c0_i32_0 = arith.constant 0 : i32
    return %arg0, %c0_i32 : i32, i32
  }
  func.func @transform_1(%arg0: i32) -> (i32, i32) {
    %c0_i32 = arith.constant 0 : i32
    %c0_i32_0 = arith.constant 0 : i32
    return %arg0, %c0_i32 : i32, i32
  }
  func.func @transform_2(%arg0: i32) -> (i32, i32) {
    %c0_i32 = arith.constant 0 : i32
    %c0_i32_0 = arith.constant 0 : i32
    %c0_i32_1 = arith.constant 0 : i32
    return %c0_i32, %c0_i32_0 : i32, i32
  }
  func.func @transform_3(%arg0: i32) -> (i32, i32) {
    %c0_i32 = arith.constant 0 : i32
    %c0_i32_0 = arith.constant 0 : i32
    return %arg0, %c0_i32 : i32, i32
  }
}

</mosaic_0001>

<llo_original>
// kernel: tpu_custom_call.1
$region0: #{tpu_custom_call.1}
  #allocation0 [shape = 'u32[]', space=smem, size = 0x4, offset = 0x4, fixed_abs, tag = 'smem constant byte address 0x4 - core index']
  #allocation1 [shape = 'u32[144,128]{1,0:T(1,128)}', space=vmem, size = 0x12000, scoped, tag = 'internal scratch']
  %s0 = inlined_call_operand.vmem [shape: f32[1,128], index: 0, kind: input, shape index: {}]
  %s1 = inlined_call_operand.vmem [shape: f32[1,128], index: 1, kind: input, shape index: {}]
  %s2 = inlined_call_operand.vmem [shape: f32[128,8], index: 2, kind: input, shape index: {}]
  %s3 = inlined_call_operand.hbm [shape: f32[1,8], index: 3, kind: output, shape index: {}]
  %s4 = sld [smem:[#allocation0]]
  $region22: #{tpu_custom_call.1} parent=0
    _
  %s6 = ssub.s32 1, %s4
  %s7 = scalar_select 0, %s6, %s4
  $region1: #{tpu_custom_call.1} parent=0
    #allocation2 [shape = 'u8[512]{0}', space=vmem, size = 0x400, scoped, tag = 'output window, operand 0, single buffered']
    #allocation3 [shape = 's32[1]{0}', space=sflag, size = 0x4, scoped, tag = 'scoped memory for tpu_custom_call.1']
    %8 = vsyncpa [#allocation3], 0
    // Predicated region
    $region2: #{tpu_custom_call.1} parent=1 // pred_check
      _
    $region3: #{tpu_custom_call.1} parent=1 // pred_check_branch
      %10 = sbr.rel (0) target = $region5
    $region4: #{tpu_custom_call.1} parent=1 // pred_region
      _
    $region5: #{tpu_custom_call.1} parent=1 // pred_fallthru
      _
    // Predicated region
    $region6: #{tpu_custom_call.1} parent=1 // pred_check
      _
    $region7: #{tpu_custom_call.1} parent=1 // pred_check_branch
      %12 = sbr.rel (0) target = $region9
    $region8: #{tpu_custom_call.1} parent=1 // pred_region
      _
    $region9: #{tpu_custom_call.1} parent=1 // pred_fallthru
      _
    // Predicated region
    $region10: #{tpu_custom_call.1} parent=1 // pred_check
      _
    $region11: #{tpu_custom_call.1} parent=1 // pred_check_branch
      %14 = sbr.rel (0) target = $region13
    $region12: #{tpu_custom_call.1} parent=1 // pred_region
      _
    $region13: #{tpu_custom_call.1} parent=1 // pred_fallthru
      _
    %v15 = vld [vmem:[%s0] sm:$0x1]
    %v16 = vld [vmem:[%s1] sm:$0x1]
    %v17 = vld [vmem:[%s2] sm:$0xff]
    %v18 = vld [vmem:[%s2 + $0x8] sm:$0xff]
    %v19 = vld [vmem:[%s2 + $0x10] sm:$0xff]
    %v20 = vld [vmem:[%s2 + $0x18] sm:$0xff]
    %v21 = vld [vmem:[%s2 + $0x20] sm:$0xff]
    %v22 = vld [vmem:[%s2 + $0x28] sm:$0xff]
    %v23 = vld [vmem:[%s2 + $0x30] sm:$0xff]
    %v24 = vld [vmem:[%s2 + $0x38] sm:$0xff]
    %v25 = vld [vmem:[%s2 + $0x40] sm:$0xff]
    %v26 = vld [vmem:[%s2 + $0x48] sm:$0xff]
    %v27 = vld [vmem:[%s2 + $0x50] sm:$0xff]
    %v28 = vld [vmem:[%s2 + $0x58] sm:$0xff]
    %v29 = vld [vmem:[%s2 + $0x60] sm:$0xff]
    %v30 = vld [vmem:[%s2 + $0x68] sm:$0xff]
    %v31 = vld [vmem:[%s2 + $0x70] sm:$0xff]
    %v32 = vld [vmem:[%s2 + $0x78] sm:$0xff]
    %33 = vmatprep.subr.mxu0 0.0
    %34 = vmatpush1.msra.mxu0 %v17
    %35 = vmatprep.subr.mxu0 0.0
    %36 = vmatpush1.msra.mxu0 %v18
    %37 = vmatprep.subr.mxu0 0.0
    %38 = vmatpush1.msra.mxu0 %v19
    %39 = vmatprep.subr.mxu0 0.0
    %40 = vmatpush1.msra.mxu0 %v20
    %41 = vmatprep.subr.mxu0 0.0
    %42 = vmatpush1.msra.mxu0 %v21
    %43 = vmatprep.subr.mxu0 0.0
    %44 = vmatpush1.msra.mxu0 %v22
    %45 = vmatprep.subr.mxu0 0.0
    %46 = vmatpush1.msra.mxu0 %v23
    %47 = vmatprep.subr.mxu0 0.0
    %48 = vmatpush1.msra.mxu0 %v24
    %49 = vmatprep.subr.mxu0 0.0
    %50 = vmatpush1.msra.mxu0 %v25
    %51 = vmatprep.subr.mxu0 0.0
    %52 = vmatpush1.msra.mxu0 %v26
    %53 = vmatprep.subr.mxu0 0.0
    %54 = vmatpush1.msra.mxu0 %v27
    %55 = vmatprep.subr.mxu0 0.0
    %56 = vmatpush1.msra.mxu0 %v28
    %57 = vmatprep.subr.mxu0 0.0
    %58 = vmatpush1.msra.mxu0 %v29
    %59 = vmatprep.subr.mxu0 0.0
    %60 = vmatpush1.msra.mxu0 %v30
    %61 = vmatprep.subr.mxu0 0.0
    %62 = vmatpush1.msra.mxu0 %v31
    %63 = vmatprep.subr.mxu0 0.0
    %64 = vmatpush1.msra.mxu0 %v32
    %65 = vmatprep.subr.mxu0 0.0
    %66 = vmatpush1.msra.mxu0 0.0
    %67 = vmatprep.subr.mxu0 0.0
    %68 = vmatpush1.msra.mxu0 0.0
    %69 = vmatprep.subr.mxu0 0.0
    %70 = vmatpush1.msra.mxu0 0.0
    %71 = vmatprep.subr.mxu0 0.0
    %72 = vmatpush1.msra.mxu0 0.0
    %73 = vmatprep.subr.mxu0 0.0
    %74 = vmatpush1.msra.mxu0 0.0
    %75 = vmatprep.subr.mxu0 0.0
    %76 = vmatpush1.msra.mxu0 0.0
    %77 = vmatprep.subr.mxu0 0.0
    %78 = vmatpush1.msra.mxu0 0.0
    %79 = vmatprep.subr.mxu0 0.0
    %80 = vmatpush1.msra.mxu0 0.0
    %81 = vmatprep.subr.mxu0 0.0
    %82 = vmatpush1.msra.mxu0 0.0
    %83 = vmatprep.subr.mxu0 0.0
    %84 = vmatpush1.msra.mxu0 0.0
    %85 = vmatprep.subr.mxu0 0.0
    %86 = vmatpush1.msra.mxu0 0.0
    %87 = vmatprep.subr.mxu0 0.0
    %88 = vmatpush1.msra.mxu0 0.0
    %89 = vmatprep.subr.mxu0 0.0
    %90 = vmatpush1.msra.mxu0 0.0
    %91 = vmatprep.subr.mxu0 0.0
    %92 = vmatpush1.msra.mxu0 0.0
    %93 = vmatprep.subr.mxu0 0.0
    %94 = vmatpush1.msra.mxu0 0.0
    %95 = vmatprep.subr.mxu0 0.0
    %96 = vmatpush1.msra.mxu0 0.0
    %97 = vmatprep.mubr.f32.mxu0 0.0
    %98 = vmatmul.mubr.f32.gmra.mrb[0].mxu0 %v15
    %v99 = vpop.f32.mrb[0].mxu0
    %v100 = vadd.f32 0.0, %v99
    %v101 = vpop.f32.mrb[0].mxu0
    %102 = vdwg.mxu0
    %v103 = vmul.f32 %v15, %v15
    %104 = vmatprep.subr.mxu0 0.0
    %105 = vmatpush1.msra.mxu0 %v17
    %106 = vmatprep.subr.mxu0 0.0
    %107 = vmatpush1.msra.mxu0 %v18
    %108 = vmatprep.subr.mxu0 0.0
    %109 = vmatpush1.msra.mxu0 %v19
    %110 = vmatprep.subr.mxu0 0.0
    %111 = vmatpush1.msra.mxu0 %v20
    %112 = vmatprep.subr.mxu0 0.0
    %113 = vmatpush1.msra.mxu0 %v21
    %114 = vmatprep.subr.mxu0 0.0
    %115 = vmatpush1.msra.mxu0 %v22
    %116 = vmatprep.subr.mxu0 0.0
    %117 = vmatpush1.msra.mxu0 %v23
    %118 = vmatprep.subr.mxu0 0.0
    %119 = vmatpush1.msra.mxu0 %v24
    %120 = vmatprep.subr.mxu0 0.0
    %121 = vmatpush1.msra.mxu0 %v25
    %122 = vmatprep.subr.mxu0 0.0
    %123 = vmatpush1.msra.mxu0 %v26
    %124 = vmatprep.subr.mxu0 0.0
    %125 = vmatpush1.msra.mxu0 %v27
    %126 = vmatprep.subr.mxu0 0.0
    %127 = vmatpush1.msra.mxu0 %v28
    %128 = vmatprep.subr.mxu0 0.0
    %129 = vmatpush1.msra.mxu0 %v29
    %130 = vmatprep.subr.mxu0 0.0
    %131 = vmatpush1.msra.mxu0 %v30
    %132 = vmatprep.subr.mxu0 0.0
    %133 = vmatpush1.msra.mxu0 %v31
    %134 = vmatprep.subr.mxu0 0.0
    %135 = vmatpush1.msra.mxu0 %v32
    %136 = vmatprep.subr.mxu0 0.0
    %137 = vmatpush1.msra.mxu0 0.0
    %138 = vmatprep.subr.mxu0 0.0
    %139 = vmatpush1.msra.mxu0 0.0
    %140 = vmatprep.subr.mxu0 0.0
    %141 = vmatpush1.msra.mxu0 0.0
    %142 = vmatprep.subr.mxu0 0.0
    %143 = vmatpush1.msra.mxu0 0.0
    %144 = vmatprep.subr.mxu0 0.0
    %145 = vmatpush1.msra.mxu0 0.0
    %146 = vmatprep.subr.mxu0 0.0
    %147 = vmatpush1.msra.mxu0 0.0
    %148 = vmatprep.subr.mxu0 0.0
    %149 = vmatpush1.msra.mxu0 0.0
    %150 = vmatprep.subr.mxu0 0.0
    %151 = vmatpush1.msra.mxu0 0.0
    %152 = vmatprep.subr.mxu0 0.0
    %153 = vmatpush1.msra.mxu0 0.0
    %154 = vmatprep.subr.mxu0 0.0
    %155 = vmatpush1.msra.mxu0 0.0
    %156 = vmatprep.subr.mxu0 0.0
    %157 = vmatpush1.msra.mxu0 0.0
    %158 = vmatprep.subr.mxu0 0.0
    %159 = vmatpush1.msra.mxu0 0.0
    %160 = vmatprep.subr.mxu0 0.0
    %161 = vmatpush1.msra.mxu0 0.0
    %162 = vmatprep.subr.mxu0 0.0
    %163 = vmatpush1.msra.mxu0 0.0
    %164 = vmatprep.subr.mxu0 0.0
    %165 = vmatpush1.msra.mxu0 0.0
    %166 = vmatprep.subr.mxu0 0.0
    %167 = vmatpush1.msra.mxu0 0.0
    %168 = vmatprep.mubr.f32.mxu0 0.0
    %169 = vmatmul.mubr.f32.gmra.mrb[0].mxu0 %v103
    %v170 = vpop.f32.mrb[0].mxu0
    %v171 = vadd.f32 0.0, %v170
    %v172 = vpop.f32.mrb[0].mxu0
    %173 = vdwg.mxu0
    %174 = vmatprep.subr.mxu0 0.0
    %175 = vmatpush1.msra.mxu0 %v17
    %176 = vmatprep.subr.mxu0 0.0
    %177 = vmatpush1.msra.mxu0 %v18
    %178 = vmatprep.subr.mxu0 0.0
    %179 = vmatpush1.msra.mxu0 %v19
    %180 = vmatprep.subr.mxu0 0.0
    %181 = vmatpush1.msra.mxu0 %v20
    %182 = vmatprep.subr.mxu0 0.0
    %183 = vmatpush1.msra.mxu0 %v21
    %184 = vmatprep.subr.mxu0 0.0
    %185 = vmatpush1.msra.mxu0 %v22
    %186 = vmatprep.subr.mxu0 0.0
    %187 = vmatpush1.msra.mxu0 %v23
    %188 = vmatprep.subr.mxu0 0.0
    %189 = vmatpush1.msra.mxu0 %v24
    %190 = vmatprep.subr.mxu0 0.0
    %191 = vmatpush1.msra.mxu0 %v25
    %192 = vmatprep.subr.mxu0 0.0
    %193 = vmatpush1.msra.mxu0 %v26
    %194 = vmatprep.subr.mxu0 0.0
    %195 = vmatpush1.msra.mxu0 %v27
    %196 = vmatprep.subr.mxu0 0.0
    %197 = vmatpush1.msra.mxu0 %v28
    %198 = vmatprep.subr.mxu0 0.0
    %199 = vmatpush1.msra.mxu0 %v29
    %200 = vmatprep.subr.mxu0 0.0
    %201 = vmatpush1.msra.mxu0 %v30
    %202 = vmatprep.subr.mxu0 0.0
    %203 = vmatpush1.msra.mxu0 %v31
    %204 = vmatprep.subr.mxu0 0.0
    %205 = vmatpush1.msra.mxu0 %v32
    %206 = vmatprep.subr.mxu0 0.0
    %207 = vmatpush1.msra.mxu0 0.0
    %208 = vmatprep.subr.mxu0 0.0
    %209 = vmatpush1.msra.mxu0 0.0
    %210 = vmatprep.subr.mxu0 0.0
    %211 = vmatpush1.msra.mxu0 0.0
    %212 = vmatprep.subr.mxu0 0.0
    %213 = vmatpush1.msra.mxu0 0.0
    %214 = vmatprep.subr.mxu0 0.0
    %215 = vmatpush1.msra.mxu0 0.0
    %216 = vmatprep.subr.mxu0 0.0
    %217 = vmatpush1.msra.mxu0 0.0
    %218 = vmatprep.subr.mxu0 0.0
    %219 = vmatpush1.msra.mxu0 0.0
    %220 = vmatprep.subr.mxu0 0.0
    %221 = vmatpush1.msra.mxu0 0.0
    %222 = vmatprep.subr.mxu0 0.0
    %223 = vmatpush1.msra.mxu0 0.0
    %224 = vmatprep.subr.mxu0 0.0
    %225 = vmatpush1.msra.mxu0 0.0
    %226 = vmatprep.subr.mxu0 0.0
    %227 = vmatpush1.msra.mxu0 0.0
    %228 = vmatprep.subr.mxu0 0.0
    %229 = vmatpush1.msra.mxu0 0.0
    %230 = vmatprep.subr.mxu0 0.0
    %231 = vmatpush1.msra.mxu0 0.0
    %232 = vmatprep.subr.mxu0 0.0
    %233 = vmatpush1.msra.mxu0 0.0
    %234 = vmatprep.subr.mxu0 0.0
    %235 = vmatpush1.msra.mxu0 0.0
    %236 = vmatprep.subr.mxu0 0.0
    %237 = vmatpush1.msra.mxu0 0.0
    %238 = vmatprep.mubr.f32.mxu0 0.0
    %239 = vmatmul.mubr.f32.gmra.mrb[0].mxu0 %v16
    %v240 = vpop.f32.mrb[0].mxu0
    %v241 = vadd.f32 0.0, %v240
    %v242 = vpop.f32.mrb[0].mxu0
    %243 = vdwg.mxu0
    %v244 = vmul.f32 %v16, %v16
    %245 = vmatprep.subr.mxu0 0.0
    %246 = vmatpush1.msra.mxu0 %v17
    %247 = vmatprep.subr.mxu0 0.0
    %248 = vmatpush1.msra.mxu0 %v18
    %249 = vmatprep.subr.mxu0 0.0
    %250 = vmatpush1.msra.mxu0 %v19
    %251 = vmatprep.subr.mxu0 0.0
    %252 = vmatpush1.msra.mxu0 %v20
    %253 = vmatprep.subr.mxu0 0.0
    %254 = vmatpush1.msra.mxu0 %v21
    %255 = vmatprep.subr.mxu0 0.0
    %256 = vmatpush1.msra.mxu0 %v22
    %257 = vmatprep.subr.mxu0 0.0
    %258 = vmatpush1.msra.mxu0 %v23
    %259 = vmatprep.subr.mxu0 0.0
    %260 = vmatpush1.msra.mxu0 %v24
    %261 = vmatprep.subr.mxu0 0.0
    %262 = vmatpush1.msra.mxu0 %v25
    %263 = vmatprep.subr.mxu0 0.0
    %264 = vmatpush1.msra.mxu0 %v26
    %265 = vmatprep.subr.mxu0 0.0
    %266 = vmatpush1.msra.mxu0 %v27
    %267 = vmatprep.subr.mxu0 0.0
    %268 = vmatpush1.msra.mxu0 %v28
    %269 = vmatprep.subr.mxu0 0.0
    %270 = vmatpush1.msra.mxu0 %v29
    %271 = vmatprep.subr.mxu0 0.0
    %272 = vmatpush1.msra.mxu0 %v30
    %273 = vmatprep.subr.mxu0 0.0
    %274 = vmatpush1.msra.mxu0 %v31
    %275 = vmatprep.subr.mxu0 0.0
    %276 = vmatpush1.msra.mxu0 %v32
    %277 = vmatprep.subr.mxu0 0.0
    %278 = vmatpush1.msra.mxu0 0.0
    %279 = vmatprep.subr.mxu0 0.0
    %280 = vmatpush1.msra.mxu0 0.0
    %281 = vmatprep.subr.mxu0 0.0
    %282 = vmatpush1.msra.mxu0 0.0
    %283 = vmatprep.subr.mxu0 0.0
    %284 = vmatpush1.msra.mxu0 0.0
    %285 = vmatprep.subr.mxu0 0.0
    %286 = vmatpush1.msra.mxu0 0.0
    %287 = vmatprep.subr.mxu0 0.0
    %288 = vmatpush1.msra.mxu0 0.0
    %289 = vmatprep.subr.mxu0 0.0
    %290 = vmatpush1.msra.mxu0 0.0
    %291 = vmatprep.subr.mxu0 0.0
    %292 = vmatpush1.msra.mxu0 0.0
    %293 = vmatprep.subr.mxu0 0.0
    %294 = vmatpush1.msra.mxu0 0.0
    %295 = vmatprep.subr.mxu0 0.0
    %296 = vmatpush1.msra.mxu0 0.0
    %297 = vmatprep.subr.mxu0 0.0
    %298 = vmatpush1.msra.mxu0 0.0
    %299 = vmatprep.subr.mxu0 0.0
    %300 = vmatpush1.msra.mxu0 0.0
    %301 = vmatprep.subr.mxu0 0.0
    %302 = vmatpush1.msra.mxu0 0.0
    %303 = vmatprep.subr.mxu0 0.0
    %304 = vmatpush1.msra.mxu0 0.0
    %305 = vmatprep.subr.mxu0 0.0
    %306 = vmatpush1.msra.mxu0 0.0
    %307 = vmatprep.subr.mxu0 0.0
    %308 = vmatpush1.msra.mxu0 0.0
    %309 = vmatprep.mubr.f32.mxu0 0.0
    %310 = vmatmul.mubr.f32.gmra.mrb[0].mxu0 %v244
    %v311 = vpop.f32.mrb[0].mxu0
    %v312 = vadd.f32 0.0, %v311
    %v313 = vpop.f32.mrb[0].mxu0
    %314 = vdwg.mxu0
    %v315 = vmul.f32 %v100, 0.0625
    %v316 = vmul.f32 %v241, 0.0625
    %v317 = vmul.f32 %v100, %v315
    %v318 = vsub.f32 %v171, %v317
    %v319 = vmul.f32 %v318, 0.06666667
    %v320 = vmax.f32 %v319, 0.0
    %v321 = vmul.f32 %v241, %v316
    %v322 = vsub.f32 %v312, %v321
    %v323 = vmul.f32 %v322, 0.06666667
    %v324 = vmax.f32 %v323, 0.0
    %v325 = vrsqrt.pop %v320
    %v326 = vmul.f32 %v320, %v325
    %vm327 = vcmp.eq.f32.partialorder %v320, inf
    %v328 = vsel %vm327, %v320, %v326
    %vm329 = vcmp.eq.f32.partialorder %v320, 0.0
    %v330 = vand.u32 %v320, 2147483648
    %v331 = vsel %vm329, %v330, %v328
    %v332 = vrsqrt.pop %v324
    %v333 = vmul.f32 %v324, %v332
    %vm334 = vcmp.eq.f32.partialorder %v324, inf
    %v335 = vsel %vm334, %v324, %v333
    %vm336 = vcmp.eq.f32.partialorder %v324, 0.0
    %v337 = vand.u32 %v324, 2147483648
    %v338 = vsel %vm336, %v337, %v335
    %v339 = vsub.f32 %v331, %v338
    %v340 = vand.u32 2147483647, %v339
    %v341 = vsub.f32 %v315, %v316
    %v342 = vand.u32 2147483647, %v341
    %v343 = vadd.f32 %v340, %v342
    %v344 = vlaneseq
    %v345 = vshrl.u32 %v344, 7
    %v346 = vstv 0
    %v347 = vadd.s32 %v345, %v346
    %vm348 = vcmp.lt.s32.totalorder %v347, 1
    %v349 = vsel %vm348, 1, 0
    %vm350 = vcmp.eq.s32.totalorder %v349, 1
    %v351 = vsel %vm350, %v343, 0.0
    %vm352 = vcmask 57344
    %353 = vst.msk [vmem:[#allocation2] sm:$0x1] %vm352, %v351
    // Predicated region
    $region14: #{tpu_custom_call.1} parent=1 // pred_check
      _
    $region15: #{tpu_custom_call.1} parent=1 // pred_check_branch
      %355 = sbr.rel (0) target = $region17
    $region16: #{tpu_custom_call.1} parent=1 // pred_region
      %s357 = ssub.s32 16, 16
      %358 = vsyncadd [#allocation3], %s357
      %s360 = sshll.u32 [#allocation2], 4
      %s361 = int_to_ptr.vmem [resolvable:$true] %s360
      %363 = dma.vmem_to_hbm [thread:$0]  %s361, 16, %s3, [#allocation3]
    $region17: #{tpu_custom_call.1} parent=1 // pred_fallthru
      _
    // Predicated region
    $region18: #{tpu_custom_call.1} parent=1 // pred_check
      _
    $region19: #{tpu_custom_call.1} parent=1 // pred_check_branch
      %365 = sbr.rel (0) target = $region21
    $region20: #{tpu_custom_call.1} parent=1 // pred_region
      %366 = dma.done [#allocation3], 16
    $region21: #{tpu_custom_call.1} parent=1 // pred_fallthru
      _
    %367 = vsyncpa [#allocation3], 1

</llo_original>
